<compile_context>
chip_gen: v7x
topology: tpu7x:2x2x1
jax: 0.10.0
libtpu: 0.0.40
codegen_flags: <defaults>
</compile_context>

<pallas_src>
import functools

import jax
import jax.numpy as jnp
from jax.experimental import pallas as pl
from jax.experimental.pallas import tpu as pltpu


def _round_up(v, m):
    return (v + m - 1) // m * m


def _gcc_kernel(x_ref, y_ref, fcs_ref, icri_ref, o_ref, *, eps, tf):
    """One (batch-tile, F-tile) step of GCC-PHAT.

    x_ref/y_ref : (TB, S)         time-domain signal tiles (resident across k)
    fcs_ref     : (S, 2*TF)       [cos | -sin] forward-DFT columns of F-tile k
    icri_ref    : (2*TF, NOUTp)   [inv-cos ; inv-sin] rows of F-tile k with the
                                  circular shift + hermitian/1/n weights baked in
    o_ref       : (TB, NOUTp)     output tile, accumulated over k
    """
    k = pl.program_id(1)

    fcs = fcs_ref[...]
    # rfft(x, n) / rfft(y, n) restricted to this F-tile; real and imaginary
    # parts come out of a single MXU pass each (shared weights).
    fx = jnp.dot(x_ref[...], fcs, preferred_element_type=jnp.float32)
    fy = jnp.dot(y_ref[...], fcs, preferred_element_type=jnp.float32)
    xr, xi = fx[:, :tf], fx[:, tf:]
    yr, yi = fy[:, :tf], fy[:, tf:]

    # Gxy = X * conj(Y)
    gr = xr * yr + xi * yi
    gi = xi * yr - xr * yi

    # PHAT weighting: phi = 1 / (|Gxy| + eps)   (reciprocal on the EUP slot)
    phi = pl.reciprocal(jnp.sqrt(gr * gr + gi * gi) + eps, approx=True)

    # [wr | wi] x [icr ; ici]  ->  partial irfft, already shifted & sliced.
    w = jnp.concatenate([gr * phi, gi * phi], axis=-1)          # (TB, 2*TF)
    part = jnp.dot(w, icri_ref[...], preferred_element_type=jnp.float32)

    @pl.when(k == 0)
    def _():
        o_ref[...] = part

    @pl.when(k > 0)
    def _():
        o_ref[...] += part


def gcc_phat(x, y, *, max_tau=None, epsilon=1e-3):
    """GCC-PHAT for dim=2 inputs (B, S); matches GCC(filt='phat').forward."""
    assert x.ndim == 2 and y.ndim == 2
    assert x.shape == y.shape, "kernel assumes equal-length signals"
    B, S = x.shape
    n = x.shape[-1] + y.shape[-1]
    F = n // 2 + 1
    max_shift = n // 2
    if max_tau is not None:
        max_shift = min(int(max_tau), max_shift)
    n_out = 2 * max_shift + 1

    f32 = jnp.float32

    # ---------------- tile sizes -----------------------------------------
    TB = 128                                    # MXU-friendly batch (M) tile
    n_out_p = _round_up(n_out, 128)             # lane-dense output width
    TF = 512                                    # F-contraction tile
    while TF > 128 and _round_up(F, 128) % TF != 0:
        TF //= 2
    # keep the double-buffered inverse-DFT tile within a v7x-safe budget
    while TF > 128 and 2 * (2 * TF * n_out_p * 4) > (12 << 20):
        TF //= 2
    Fp = _round_up(F, TF)
    Bp = _round_up(B, TB)
    nk = Fp // TF
    nb = Bp // TB

    # ---------------- batch padding (zeros -> zero output rows) ----------
    xp = jnp.zeros((Bp, S), f32).at[:B].set(x.astype(f32))
    yp = jnp.zeros((Bp, S), f32).at[:B].set(y.astype(f32))

    # ---------------- forward DFT matrix, stacked [cos | -sin] per tile --
    t = jnp.arange(S, dtype=f32)[:, None]
    f = jnp.arange(Fp)[None, :]
    ang_f = 2.0 * jnp.pi * t * f.astype(f32) / n
    fvalid = f < F                               # zero the padded F columns
    fc = jnp.where(fvalid, jnp.cos(ang_f), 0.0)
    fs = jnp.where(fvalid, -jnp.sin(ang_f), 0.0)
    fcs = jnp.concatenate(
        [fc.reshape(S, nk, TF), fs.reshape(S, nk, TF)], axis=2
    ).reshape(S, 2 * Fp)                         # tile k cols = [fc_k | fs_k]

    # ------- inverse DFT matrix: shift + output slice + weights baked in --
    fi = jnp.arange(Fp)[:, None]
    j = jnp.arange(n_out_p)[None, :]
    t_out = jnp.mod(j - max_shift, n)            # out[:, j] = cc[:, t_out(j)]
    ang_i = 2.0 * jnp.pi * fi.astype(f32) * t_out.astype(f32) / n
    nyq = n // 2 if n % 2 == 0 else -1
    wgt = jnp.where((fi == 0) | (fi == nyq), 1.0, 2.0).astype(f32) / n
    valid = (fi < F) & (j < n_out)               # zero padded rows/cols
    icr = jnp.where(valid, wgt * jnp.cos(ang_i), 0.0)
    ici = jnp.where(valid, -wgt * jnp.sin(ang_i), 0.0)
    icri = jnp.concatenate(
        [icr.reshape(nk, TF, n_out_p), ici.reshape(nk, TF, n_out_p)], axis=1
    ).reshape(2 * Fp, n_out_p)                   # tile k rows = [icr_k ; ici_k]

    kernel = functools.partial(_gcc_kernel, eps=float(epsilon), tf=TF)

    tile_bytes = 4 * (2 * 2 * TB * S + 2 * S * 2 * TF
                      + 2 * 2 * TF * n_out_p + 2 * TB * n_out_p)
    vmem_limit = int(min(max(2 * tile_bytes, 32 << 20), 56 << 20))

    cost = pl.CostEstimate(
        flops=8 * Bp * S * Fp + 4 * Bp * Fp * n_out_p,
        transcendentals=2 * Bp * Fp,
        bytes_accessed=4 * (2 * Bp * S + S * 2 * Fp + 2 * Fp * n_out_p
                            + Bp * n_out_p),
    )

    out = pl.pallas_call(
        kernel,
        out_shape=jax.ShapeDtypeStruct((Bp, n_out_p), f32),
        grid=(nb, nk),
        in_specs=[
            pl.BlockSpec((TB, S), lambda i, k: (i, 0)),            # x
            pl.BlockSpec((TB, S), lambda i, k: (i, 0)),            # y
            pl.BlockSpec((S, 2 * TF), lambda i, k: (0, k)),        # fwd DFT
            pl.BlockSpec((2 * TF, n_out_p), lambda i, k: (k, 0)),  # inv DFT
        ],
        out_specs=pl.BlockSpec((TB, n_out_p), lambda i, k: (i, 0)),
        compiler_params=pltpu.CompilerParams(
            dimension_semantics=("parallel", "arbitrary"),
            vmem_limit_bytes=vmem_limit,
        ),
        cost_estimate=cost,
    )(xp, yp, fcs, icri)

    return out[:B, :n_out]


def _gcc_phat_ref(x, y, *, max_tau=None, epsilon=1e-3):
    """Pure-JAX reference mirroring the PyTorch forward (filt='phat')."""
    n = x.shape[-1] + y.shape[-1]
    X = jnp.fft.rfft(x, n=n)
    Y = jnp.fft.rfft(y, n=n)
    Gxy = X * jnp.conj(Y)
    phi = 1.0 / (jnp.abs(Gxy) + epsilon)
    cc = jnp.fft.irfft(Gxy * phi, n=n)
    max_shift = n // 2
    if max_tau is not None:
        max_shift = min(int(max_tau), max_shift)
    return jnp.concatenate([cc[:, -max_shift:], cc[:, :max_shift + 1]], axis=-1)


if __name__ == "__main__":
    key = jax.random.PRNGKey(0)
    kx, ky = jax.random.split(key)
    B, S = 2, 8                      # small shapes: batch=2, seq=8 -> n=16
    x = jax.random.normal(kx, (B, S), dtype=jnp.float32)
    y = jax.random.normal(ky, (B, S), dtype=jnp.float32)

    out = jax.block_until_ready(gcc_phat(x, y, epsilon=1e-3))

    ref = _gcc_phat_ref(x, y, epsilon=1e-3)
    assert out.shape == ref.shape, (out.shape, ref.shape)
    err = float(jnp.max(jnp.abs(out - ref)))
    assert jnp.allclose(out, ref, atol=2e-3, rtol=2e-3), err

    print("KERNEL_OK")
</pallas_src>

<mosaic_0001>
module attributes {stable_mosaic.version = 11 : i64} {
  func.func @_gcc_kernel(%arg0: i32, %arg1: i32, %arg2: memref<128x8xf32, #tpu.memory_space<vmem>>, %arg3: memref<128x8xf32, #tpu.memory_space<vmem>>, %arg4: memref<8x256xf32, #tpu.memory_space<vmem>>, %arg5: memref<256x128xf32, #tpu.memory_space<vmem>>, %arg6: memref<128x128xf32, #tpu.memory_space<vmem>>) attributes {dimension_semantics = [#tpu.dimension_semantics<parallel>, #tpu.dimension_semantics<arbitrary>], iteration_bounds = array<i64: 1, 1>, scalar_prefetch = 0 : i64, scratch_operands = 0 : i64, tpu.core_type = #tpu.core_type<tc>, window_params = [{transform_indices = @transform_0, window_bounds = array<i64: 128, 8>}, {transform_indices = @transform_1, window_bounds = array<i64: 128, 8>}, {transform_indices = @transform_2, window_bounds = array<i64: 8, 256>}, {transform_indices = @transform_3, window_bounds = array<i64: 256, 128>}, {transform_indices = @transform_4, window_bounds = array<i64: 128, 128>}]} {
    %c0 = arith.constant 0 : index
    %c0_0 = arith.constant 0 : index
    %0 = vector.load %arg4[%c0, %c0_0] : memref<8x256xf32, #tpu.memory_space<vmem>>, vector<8x256xf32>
    %c0_1 = arith.constant 0 : index
    %c0_2 = arith.constant 0 : index
    %1 = vector.load %arg2[%c0_1, %c0_2] : memref<128x8xf32, #tpu.memory_space<vmem>>, vector<128x8xf32>
    %cst = arith.constant dense<0.000000e+00> : vector<128x256xf32>
    %2 = tpu.matmul %1, %0, %cst {dimension_numbers = #tpu.dot_dimension_numbers<[1], [0], [0], [1], [0, 0, 1, 1], [], []>} : vector<128x8xf32>, vector<8x256xf32>, vector<128x256xf32> -> vector<128x256xf32>
    %c0_3 = arith.constant 0 : index
    %c0_4 = arith.constant 0 : index
    %3 = vector.load %arg3[%c0_3, %c0_4] : memref<128x8xf32, #tpu.memory_space<vmem>>, vector<128x8xf32>
    %cst_5 = arith.constant dense<0.000000e+00> : vector<128x256xf32>
    %4 = tpu.matmul %3, %0, %cst_5 {dimension_numbers = #tpu.dot_dimension_numbers<[1], [0], [0], [1], [0, 0, 1, 1], [], []>} : vector<128x8xf32>, vector<8x256xf32>, vector<128x256xf32> -> vector<128x256xf32>
    %5 = vector.extract_strided_slice %2 {offsets = [0, 0], sizes = [128, 128], strides = [1, 1]} : vector<128x256xf32> to vector<128x128xf32>
    %6 = vector.extract_strided_slice %2 {offsets = [0, 128], sizes = [128, 128], strides = [1, 1]} : vector<128x256xf32> to vector<128x128xf32>
    %7 = vector.extract_strided_slice %4 {offsets = [0, 0], sizes = [128, 128], strides = [1, 1]} : vector<128x256xf32> to vector<128x128xf32>
    %8 = vector.extract_strided_slice %4 {offsets = [0, 128], sizes = [128, 128], strides = [1, 1]} : vector<128x256xf32> to vector<128x128xf32>
    %9 = arith.mulf %5, %7 : vector<128x128xf32>
    %10 = arith.mulf %6, %8 : vector<128x128xf32>
    %11 = arith.addf %9, %10 : vector<128x128xf32>
    %12 = arith.mulf %6, %7 : vector<128x128xf32>
    %13 = arith.mulf %5, %8 : vector<128x128xf32>
    %14 = arith.subf %12, %13 : vector<128x128xf32>
    %15 = arith.mulf %11, %11 : vector<128x128xf32>
    %16 = arith.mulf %14, %14 : vector<128x128xf32>
    %17 = arith.addf %15, %16 : vector<128x128xf32>
    %18 = math.sqrt %17 : vector<128x128xf32>
    %cst_6 = arith.constant 1.000000e-03 : f32
    %19 = vector.broadcast %cst_6 : f32 to vector<128x128xf32>
    %20 = arith.addf %18, %19 : vector<128x128xf32>
    %21 = tpu.reciprocal %20 {approx = true} : vector<128x128xf32> -> vector<128x128xf32>
    %22 = arith.mulf %11, %21 : vector<128x128xf32>
    %23 = arith.mulf %14, %21 : vector<128x128xf32>
    %24 = tpu.concatenate %22, %23 in 1 : vector<128x128xf32>, vector<128x128xf32> -> vector<128x256xf32>
    %c0_7 = arith.constant 0 : index
    %c0_8 = arith.constant 0 : index
    %25 = vector.load %arg5[%c0_7, %c0_8] : memref<256x128xf32, #tpu.memory_space<vmem>>, vector<256x128xf32>
    %cst_9 = arith.constant dense<0.000000e+00> : vector<128x128xf32>
    %26 = tpu.matmul %24, %25, %cst_9 {dimension_numbers = #tpu.dot_dimension_numbers<[1], [0], [0], [1], [0, 0, 1, 1], [], []>} : vector<128x256xf32>, vector<256x128xf32>, vector<128x128xf32> -> vector<128x128xf32>
    %c0_i32 = arith.constant 0 : i32
    %27 = arith.cmpi eq, %arg1, %c0_i32 : i32
    %28 = arith.extui %27 : i1 to i32
    %c0_i32_10 = arith.constant 0 : i32
    %29 = arith.cmpi ne, %28, %c0_i32_10 : i32
    scf.if %29 {
      %c0_13 = arith.constant 0 : index
      %c0_14 = arith.constant 0 : index
      %33 = vector.load %arg6[%c0_13, %c0_14] : memref<128x128xf32, #tpu.memory_space<vmem>>, vector<128x128xf32>
      tpu.vector_store %arg6[%c0_13, %c0_14], %26 {strides = array<i32>} : memref<128x128xf32, #tpu.memory_space<vmem>>, vector<128x128xf32>,
    } else {
    }
    %c0_i32_11 = arith.constant 0 : i32
    %30 = arith.cmpi sgt, %arg1, %c0_i32_11 : i32
    %31 = arith.extui %30 : i1 to i32
    %c0_i32_12 = arith.constant 0 : i32
    %32 = arith.cmpi ne, %31, %c0_i32_12 : i32
    scf.if %32 {
      %c0_13 = arith.constant 0 : index
      %c0_14 = arith.constant 0 : index
      %33 = vector.load %arg6[%c0_13, %c0_14] : memref<128x128xf32, #tpu.memory_space<vmem>>, vector<128x128xf32>
      %34 = arith.addf %33, %26 : vector<128x128xf32>
      %c0_15 = arith.constant 0 : index
      %c0_16 = arith.constant 0 : index
      %35 = vector.load %arg6[%c0_15, %c0_16] : memref<128x128xf32, #tpu.memory_space<vmem>>, vector<128x128xf32>
      tpu.vector_store %arg6[%c0_15, %c0_16], %34 {strides = array<i32>} : memref<128x128xf32, #tpu.memory_space<vmem>>, vector<128x128xf32>,
    } else {
    }
    return
  }
  func.func @transform_0(%arg0: i32, %arg1: i32) -> (i32, i32) {
    %c0_i32 = arith.constant 0 : i32
    %c0_i32_0 = arith.constant 0 : i32
    return %arg0, %c0_i32 : i32, i32
  }
  func.func @transform_1(%arg0: i32, %arg1: i32) -> (i32, i32) {
    %c0_i32 = arith.constant 0 : i32
    %c0_i32_0 = arith.constant 0 : i32
    return %arg0, %c0_i32 : i32, i32
  }
  func.func @transform_2(%arg0: i32, %arg1: i32) -> (i32, i32) {
    %c0_i32 = arith.constant 0 : i32
    %c0_i32_0 = arith.constant 0 : i32
    return %c0_i32, %arg1 : i32, i32
  }
  func.func @transform_3(%arg0: i32, %arg1: i32) -> (i32, i32) {
    %c0_i32 = arith.constant 0 : i32
    %c0_i32_0 = arith.constant 0 : i32
    return %arg1, %c0_i32 : i32, i32
  }
  func.func @transform_4(%arg0: i32, %arg1: i32) -> (i32, i32) {
    %c0_i32 = arith.constant 0 : i32
    %c0_i32_0 = arith.constant 0 : i32
    return %arg0, %c0_i32 : i32, i32
  }
}

</mosaic_0001>

<llo_original>
// kernel: tpu_custom_call.1
$region0: #{tpu_custom_call.1}
  #allocation0 [shape = 'u32[]', space=smem, size = 0x4, offset = 0x4, fixed_abs, tag = 'smem constant byte address 0x4 - core index']
  #allocation1 [shape = 'u32[144,128]{1,0:T(1,128)}', space=vmem, size = 0x12000, scoped, tag = 'internal scratch']
  %s0 = inlined_call_operand.vmem [shape: f32[128,8], index: 0, kind: input, shape index: {}]
  %s1 = inlined_call_operand.vmem [shape: f32[128,8], index: 1, kind: input, shape index: {}]
  %s2 = inlined_call_operand.vmem [shape: f32[8,256], index: 2, kind: input, shape index: {}]
  %s3 = inlined_call_operand.vmem [shape: f32[256,128], index: 3, kind: input, shape index: {}]
  %s4 = inlined_call_operand.hbm [shape: f32[128,128], index: 4, kind: output, shape index: {}]
  %s5 = sld [smem:[#allocation0]]
  $region34: #{tpu_custom_call.1} parent=0
    _
  %s7 = ssub.s32 1, %s5
  %s8 = scalar_select 0, %s7, %s5
  $region1: #{tpu_custom_call.1} parent=0
    #allocation2 [shape = 'u8[65536]{0}', space=vmem, size = 0x10000, scoped, tag = 'output window, operand 0, single buffered']
    #allocation3 [shape = 's32[1]{0}', space=sflag, size = 0x4, scoped, tag = 'scoped memory for tpu_custom_call.1']
    %9 = vsyncpa [#allocation3], 0
    // Predicated region
    $region2: #{tpu_custom_call.1} parent=1 // pred_check
      _
    $region3: #{tpu_custom_call.1} parent=1 // pred_check_branch
      %11 = sbr.rel (0) target = $region5
    $region4: #{tpu_custom_call.1} parent=1 // pred_region
      _
    $region5: #{tpu_custom_call.1} parent=1 // pred_fallthru
      _
    // Predicated region
    $region6: #{tpu_custom_call.1} parent=1 // pred_check
      _
    $region7: #{tpu_custom_call.1} parent=1 // pred_check_branch
      %13 = sbr.rel (0) target = $region9
    $region8: #{tpu_custom_call.1} parent=1 // pred_region
      _
    $region9: #{tpu_custom_call.1} parent=1 // pred_fallthru
      _
    // Predicated region
    $region10: #{tpu_custom_call.1} parent=1 // pred_check
      _
    $region11: #{tpu_custom_call.1} parent=1 // pred_check_branch
      %15 = sbr.rel (0) target = $region13
    $region12: #{tpu_custom_call.1} parent=1 // pred_region
      _
    $region13: #{tpu_custom_call.1} parent=1 // pred_fallthru
      _
    // Predicated region
    $region14: #{tpu_custom_call.1} parent=1 // pred_check
      _
    $region15: #{tpu_custom_call.1} parent=1 // pred_check_branch
      %17 = sbr.rel (0) target = $region17
    $region16: #{tpu_custom_call.1} parent=1 // pred_region
      _
    $region17: #{tpu_custom_call.1} parent=1 // pred_fallthru
      _
    %v18 = vld [vmem:[%s2] sm:$0xff]
    %v19 = vld [vmem:[%s2 + $0x8] sm:$0xff]
    %v20 = vld [vmem:[%s0] sm:$0xff]
    %v21 = vld [vmem:[%s0 + $0x8] sm:$0xff]
    %v22 = vld [vmem:[%s0 + $0x10] sm:$0xff]
    %v23 = vld [vmem:[%s0 + $0x18] sm:$0xff]
    %v24 = vld [vmem:[%s0 + $0x20] sm:$0xff]
    %v25 = vld [vmem:[%s0 + $0x28] sm:$0xff]
    %v26 = vld [vmem:[%s0 + $0x30] sm:$0xff]
    %v27 = vld [vmem:[%s0 + $0x38] sm:$0xff]
    %v28 = vld [vmem:[%s0 + $0x40] sm:$0xff]
    %v29 = vld [vmem:[%s0 + $0x48] sm:$0xff]
    %v30 = vld [vmem:[%s0 + $0x50] sm:$0xff]
    %v31 = vld [vmem:[%s0 + $0x58] sm:$0xff]
    %v32 = vld [vmem:[%s0 + $0x60] sm:$0xff]
    %v33 = vld [vmem:[%s0 + $0x68] sm:$0xff]
    %v34 = vld [vmem:[%s0 + $0x70] sm:$0xff]
    %v35 = vld [vmem:[%s0 + $0x78] sm:$0xff]
    %vm36 = vcmask 64512
    %v38 = vsel %vm36, %v20, 0
    %v41 = vsel %vm36, %v21, 0
    %v44 = vsel %vm36, %v22, 0
    %v47 = vsel %vm36, %v23, 0
    %v50 = vsel %vm36, %v24, 0
    %v53 = vsel %vm36, %v25, 0
    %v56 = vsel %vm36, %v26, 0
    %v59 = vsel %vm36, %v27, 0
    %v62 = vsel %vm36, %v28, 0
    %v65 = vsel %vm36, %v29, 0
    %v68 = vsel %vm36, %v30, 0
    %v71 = vsel %vm36, %v31, 0
    %v74 = vsel %vm36, %v32, 0
    %v77 = vsel %vm36, %v33, 0
    %v80 = vsel %vm36, %v34, 0
    %v83 = vsel %vm36, %v35, 0
    %85 = vmatprep.subr.mxu0 %v19
    %86 = vmatpush1.msra.mxu0 %v18
    %87 = vmatprep.subr.mxu0 0.0
    %88 = vmatpush1.msra.mxu0 0.0
    %89 = vmatprep.subr.mxu0 0.0
    %90 = vmatpush1.msra.mxu0 0.0
    %91 = vmatprep.subr.mxu0 0.0
    %92 = vmatpush1.msra.mxu0 0.0
    %93 = vmatprep.subr.mxu0 0.0
    %94 = vmatpush1.msra.mxu0 0.0
    %95 = vmatprep.subr.mxu0 0.0
    %96 = vmatpush1.msra.mxu0 0.0
    %97 = vmatprep.subr.mxu0 0.0
    %98 = vmatpush1.msra.mxu0 0.0
    %99 = vmatprep.subr.mxu0 0.0
    %100 = vmatpush1.msra.mxu0 0.0
    %101 = vmatprep.subr.mxu0 0.0
    %102 = vmatpush1.msra.mxu0 0.0
    %103 = vmatprep.subr.mxu0 0.0
    %104 = vmatpush1.msra.mxu0 0.0
    %105 = vmatprep.subr.mxu0 0.0
    %106 = vmatpush1.msra.mxu0 0.0
    %107 = vmatprep.subr.mxu0 0.0
    %108 = vmatpush1.msra.mxu0 0.0
    %109 = vmatprep.subr.mxu0 0.0
    %110 = vmatpush1.msra.mxu0 0.0
    %111 = vmatprep.subr.mxu0 0.0
    %112 = vmatpush1.msra.mxu0 0.0
    %113 = vmatprep.subr.mxu0 0.0
    %114 = vmatpush1.msra.mxu0 0.0
    %115 = vmatprep.subr.mxu0 0.0
    %116 = vmatpush1.msra.mxu0 0.0
    %117 = vmatprep.subr.mxu0 0.0
    %118 = vmatpush1.msra.mxu0 0.0
    %119 = vmatprep.subr.mxu0 0.0
    %120 = vmatpush1.msra.mxu0 0.0
    %121 = vmatprep.subr.mxu0 0.0
    %122 = vmatpush1.msra.mxu0 0.0
    %123 = vmatprep.subr.mxu0 0.0
    %124 = vmatpush1.msra.mxu0 0.0
    %125 = vmatprep.subr.mxu0 0.0
    %126 = vmatpush1.msra.mxu0 0.0
    %127 = vmatprep.subr.mxu0 0.0
    %128 = vmatpush1.msra.mxu0 0.0
    %129 = vmatprep.subr.mxu0 0.0
    %130 = vmatpush1.msra.mxu0 0.0
    %131 = vmatprep.subr.mxu0 0.0
    %132 = vmatpush1.msra.mxu0 0.0
    %133 = vmatprep.subr.mxu0 0.0
    %134 = vmatpush1.msra.mxu0 0.0
    %135 = vmatprep.subr.mxu0 0.0
    %136 = vmatpush1.msra.mxu0 0.0
    %137 = vmatprep.subr.mxu0 0.0
    %138 = vmatpush1.msra.mxu0 0.0
    %139 = vmatprep.subr.mxu0 0.0
    %140 = vmatpush1.msra.mxu0 0.0
    %141 = vmatprep.subr.mxu0 0.0
    %142 = vmatpush1.msra.mxu0 0.0
    %143 = vmatprep.subr.mxu0 0.0
    %144 = vmatpush1.msra.mxu0 0.0
    %145 = vmatprep.subr.mxu0 0.0
    %146 = vmatpush1.msra.mxu0 0.0
    %147 = vmatprep.subr.mxu0 0.0
    %148 = vmatpush1.msra.mxu0 0.0
    %149 = vmatprep.mubr.f32.mxu0 0.0
    %150 = vmatmul.mubr.f32.gmra.mrb[0].mxu0 %v38
    %v151 = vpop.f32.mrb[0].mxu0
    %v152 = vadd.f32 0.0, %v151
    %v153 = vpop.f32.mrb[0].mxu0
    %v154 = vadd.f32 0.0, %v153
    %155 = vmatprep.mubr.f32.mxu0 0.0
    %156 = vmatmul.mubr.f32.gmra.mrb[0].mxu0 %v41
    %v157 = vpop.f32.mrb[0].mxu0
    %v158 = vadd.f32 0.0, %v157
    %v159 = vpop.f32.mrb[0].mxu0
    %v160 = vadd.f32 0.0, %v159
    %161 = vmatprep.mubr.f32.mxu0 0.0
    %162 = vmatmul.mubr.f32.gmra.mrb[0].mxu0 %v44
    %v163 = vpop.f32.mrb[0].mxu0
    %v164 = vadd.f32 0.0, %v163
    %v165 = vpop.f32.mrb[0].mxu0
    %v166 = vadd.f32 0.0, %v165
    %167 = vmatprep.mubr.f32.mxu0 0.0
    %168 = vmatmul.mubr.f32.gmra.mrb[0].mxu0 %v47
    %v169 = vpop.f32.mrb[0].mxu0
    %v170 = vadd.f32 0.0, %v169
    %v171 = vpop.f32.mrb[0].mxu0
    %v172 = vadd.f32 0.0, %v171
    %173 = vmatprep.mubr.f32.mxu0 0.0
    %174 = vmatmul.mubr.f32.gmra.mrb[0].mxu0 %v50
    %v175 = vpop.f32.mrb[0].mxu0
    %v176 = vadd.f32 0.0, %v175
    %v177 = vpop.f32.mrb[0].mxu0
    %v178 = vadd.f32 0.0, %v177
    %179 = vmatprep.mubr.f32.mxu0 0.0
    %180 = vmatmul.mubr.f32.gmra.mrb[0].mxu0 %v53
    %v181 = vpop.f32.mrb[0].mxu0
    %v182 = vadd.f32 0.0, %v181
    %v183 = vpop.f32.mrb[0].mxu0
    %v184 = vadd.f32 0.0, %v183
    %185 = vmatprep.mubr.f32.mxu0 0.0
    %186 = vmatmul.mubr.f32.gmra.mrb[0].mxu0 %v56
    %v187 = vpop.f32.mrb[0].mxu0
    %v188 = vadd.f32 0.0, %v187
    %v189 = vpop.f32.mrb[0].mxu0
    %v190 = vadd.f32 0.0, %v189
    %191 = vmatprep.mubr.f32.mxu0 0.0
    %192 = vmatmul.mubr.f32.gmra.mrb[0].mxu0 %v59
    %v193 = vpop.f32.mrb[0].mxu0
    %v194 = vadd.f32 0.0, %v193
    %v195 = vpop.f32.mrb[0].mxu0
    %v196 = vadd.f32 0.0, %v195
    %197 = vmatprep.mubr.f32.mxu0 0.0
    %198 = vmatmul.mubr.f32.gmra.mrb[0].mxu0 %v62
    %v199 = vpop.f32.mrb[0].mxu0
    %v200 = vadd.f32 0.0, %v199
    %v201 = vpop.f32.mrb[0].mxu0
    %v202 = vadd.f32 0.0, %v201
    %203 = vmatprep.mubr.f32.mxu0 0.0
    %204 = vmatmul.mubr.f32.gmra.mrb[0].mxu0 %v65
    %v205 = vpop.f32.mrb[0].mxu0
    %v206 = vadd.f32 0.0, %v205
    %v207 = vpop.f32.mrb[0].mxu0
    %v208 = vadd.f32 0.0, %v207
    %209 = vmatprep.mubr.f32.mxu0 0.0
    %210 = vmatmul.mubr.f32.gmra.mrb[0].mxu0 %v68
    %v211 = vpop.f32.mrb[0].mxu0
    %v212 = vadd.f32 0.0, %v211
    %v213 = vpop.f32.mrb[0].mxu0
    %v214 = vadd.f32 0.0, %v213
    %215 = vmatprep.mubr.f32.mxu0 0.0
    %216 = vmatmul.mubr.f32.gmra.mrb[0].mxu0 %v71
    %v217 = vpop.f32.mrb[0].mxu0
    %v218 = vadd.f32 0.0, %v217
    %v219 = vpop.f32.mrb[0].mxu0
    %v220 = vadd.f32 0.0, %v219
    %221 = vmatprep.mubr.f32.mxu0 0.0
    %222 = vmatmul.mubr.f32.gmra.mrb[0].mxu0 %v74
    %v223 = vpop.f32.mrb[0].mxu0
    %v224 = vadd.f32 0.0, %v223
    %v225 = vpop.f32.mrb[0].mxu0
    %v226 = vadd.f32 0.0, %v225
    %227 = vmatprep.mubr.f32.mxu0 0.0
    %228 = vmatmul.mubr.f32.gmra.mrb[0].mxu0 %v77
    %v229 = vpop.f32.mrb[0].mxu0
    %v230 = vadd.f32 0.0, %v229
    %v231 = vpop.f32.mrb[0].mxu0
    %v232 = vadd.f32 0.0, %v231
    %233 = vmatprep.mubr.f32.mxu0 0.0
    %234 = vmatmul.mubr.f32.gmra.mrb[0].mxu0 %v80
    %v235 = vpop.f32.mrb[0].mxu0
    %v236 = vadd.f32 0.0, %v235
    %v237 = vpop.f32.mrb[0].mxu0
    %v238 = vadd.f32 0.0, %v237
    %239 = vmatprep.mubr.f32.mxu0 0.0
    %240 = vmatmul.mubr.f32.gmra.mrb[0].mxu0 %v83
    %v241 = vpop.f32.mrb[0].mxu0
    %v242 = vadd.f32 0.0, %v241
    %v243 = vpop.f32.mrb[0].mxu0
    %v244 = vadd.f32 0.0, %v243
    %245 = vdwg.mxu0
    %v246 = vld [vmem:[%s1] sm:$0xff]
    %v247 = vld [vmem:[%s1 + $0x8] sm:$0xff]
    %v248 = vld [vmem:[%s1 + $0x10] sm:$0xff]
    %v249 = vld [vmem:[%s1 + $0x18] sm:$0xff]
    %v250 = vld [vmem:[%s1 + $0x20] sm:$0xff]
    %v251 = vld [vmem:[%s1 + $0x28] sm:$0xff]
    %v252 = vld [vmem:[%s1 + $0x30] sm:$0xff]
    %v253 = vld [vmem:[%s1 + $0x38] sm:$0xff]
    %v254 = vld [vmem:[%s1 + $0x40] sm:$0xff]
    %v255 = vld [vmem:[%s1 + $0x48] sm:$0xff]
    %v256 = vld [vmem:[%s1 + $0x50] sm:$0xff]
    %v257 = vld [vmem:[%s1 + $0x58] sm:$0xff]
    %v258 = vld [vmem:[%s1 + $0x60] sm:$0xff]
    %v259 = vld [vmem:[%s1 + $0x68] sm:$0xff]
    %v260 = vld [vmem:[%s1 + $0x70] sm:$0xff]
    %v261 = vld [vmem:[%s1 + $0x78] sm:$0xff]
    %v263 = vsel %vm36, %v246, 0
    %v266 = vsel %vm36, %v247, 0
    %v269 = vsel %vm36, %v248, 0
    %v272 = vsel %vm36, %v249, 0
    %v275 = vsel %vm36, %v250, 0
    %v278 = vsel %vm36, %v251, 0
    %v281 = vsel %vm36, %v252, 0
    %v284 = vsel %vm36, %v253, 0
    %v287 = vsel %vm36, %v254, 0
    %v290 = vsel %vm36, %v255, 0
    %v293 = vsel %vm36, %v256, 0
    %v296 = vsel %vm36, %v257, 0
    %v299 = vsel %vm36, %v258, 0
    %v302 = vsel %vm36, %v259, 0
    %v305 = vsel %vm36, %v260, 0
    %v308 = vsel %vm36, %v261, 0
    %310 = vmatprep.subr.mxu0 %v19
    %311 = vmatpush1.msra.mxu0 %v18
    %312 = vmatprep.subr.mxu0 0.0
    %313 = vmatpush1.msra.mxu0 0.0
    %314 = vmatprep.subr.mxu0 0.0
    %315 = vmatpush1.msra.mxu0 0.0
    %316 = vmatprep.subr.mxu0 0.0
    %317 = vmatpush1.msra.mxu0 0.0
    %318 = vmatprep.subr.mxu0 0.0
    %319 = vmatpush1.msra.mxu0 0.0
    %320 = vmatprep.subr.mxu0 0.0
    %321 = vmatpush1.msra.mxu0 0.0
    %322 = vmatprep.subr.mxu0 0.0
    %323 = vmatpush1.msra.mxu0 0.0
    %324 = vmatprep.subr.mxu0 0.0
    %325 = vmatpush1.msra.mxu0 0.0
    %326 = vmatprep.subr.mxu0 0.0
    %327 = vmatpush1.msra.mxu0 0.0
    %328 = vmatprep.subr.mxu0 0.0
    %329 = vmatpush1.msra.mxu0 0.0
    %330 = vmatprep.subr.mxu0 0.0
    %331 = vmatpush1.msra.mxu0 0.0
    %332 = vmatprep.subr.mxu0 0.0
    %333 = vmatpush1.msra.mxu0 0.0
    %334 = vmatprep.subr.mxu0 0.0
    %335 = vmatpush1.msra.mxu0 0.0
    %336 = vmatprep.subr.mxu0 0.0
    %337 = vmatpush1.msra.mxu0 0.0
    %338 = vmatprep.subr.mxu0 0.0
    %339 = vmatpush1.msra.mxu0 0.0
    %340 = vmatprep.subr.mxu0 0.0
    %341 = vmatpush1.msra.mxu0 0.0
    %342 = vmatprep.subr.mxu0 0.0
    %343 = vmatpush1.msra.mxu0 0.0
    %344 = vmatprep.subr.mxu0 0.0
    %345 = vmatpush1.msra.mxu0 0.0
    %346 = vmatprep.subr.mxu0 0.0
    %347 = vmatpush1.msra.mxu0 0.0
    %348 = vmatprep.subr.mxu0 0.0
    %349 = vmatpush1.msra.mxu0 0.0
    %350 = vmatprep.subr.mxu0 0.0
    %351 = vmatpush1.msra.mxu0 0.0
    %352 = vmatprep.subr.mxu0 0.0
    %353 = vmatpush1.msra.mxu0 0.0
    %354 = vmatprep.subr.mxu0 0.0
    %355 = vmatpush1.msra.mxu0 0.0
    %356 = vmatprep.subr.mxu0 0.0
    %357 = vmatpush1.msra.mxu0 0.0
    %358 = vmatprep.subr.mxu0 0.0
    %359 = vmatpush1.msra.mxu0 0.0
    %360 = vmatprep.subr.mxu0 0.0
    %361 = vmatpush1.msra.mxu0 0.0
    %362 = vmatprep.subr.mxu0 0.0
    %363 = vmatpush1.msra.mxu0 0.0
    %364 = vmatprep.subr.mxu0 0.0
    %365 = vmatpush1.msra.mxu0 0.0
    %366 = vmatprep.subr.mxu0 0.0
    %367 = vmatpush1.msra.mxu0 0.0
    %368 = vmatprep.subr.mxu0 0.0
    %369 = vmatpush1.msra.mxu0 0.0
    %370 = vmatprep.subr.mxu0 0.0
    %371 = vmatpush1.msra.mxu0 0.0
    %372 = vmatprep.subr.mxu0 0.0
    %373 = vmatpush1.msra.mxu0 0.0
    %374 = vmatprep.mubr.f32.mxu0 0.0
    %375 = vmatmul.mubr.f32.gmra.mrb[0].mxu0 %v263
    %v376 = vpop.f32.mrb[0].mxu0
    %v377 = vadd.f32 0.0, %v376
    %v378 = vpop.f32.mrb[0].mxu0
    %v379 = vadd.f32 0.0, %v378
    %380 = vmatprep.mubr.f32.mxu0 0.0
    %381 = vmatmul.mubr.f32.gmra.mrb[0].mxu0 %v266
    %v382 = vpop.f32.mrb[0].mxu0
    %v383 = vadd.f32 0.0, %v382
    %v384 = vpop.f32.mrb[0].mxu0
    %v385 = vadd.f32 0.0, %v384
    %386 = vmatprep.mubr.f32.mxu0 0.0
    %387 = vmatmul.mubr.f32.gmra.mrb[0].mxu0 %v269
    %v388 = vpop.f32.mrb[0].mxu0
    %v389 = vadd.f32 0.0, %v388
    %v390 = vpop.f32.mrb[0].mxu0
    %v391 = vadd.f32 0.0, %v390
    %392 = vmatprep.mubr.f32.mxu0 0.0
    %393 = vmatmul.mubr.f32.gmra.mrb[0].mxu0 %v272
    %v394 = vpop.f32.mrb[0].mxu0
    %v395 = vadd.f32 0.0, %v394
    %v396 = vpop.f32.mrb[0].mxu0
    %v397 = vadd.f32 0.0, %v396
    %398 = vmatprep.mubr.f32.mxu0 0.0
    %399 = vmatmul.mubr.f32.gmra.mrb[0].mxu0 %v275
    %v400 = vpop.f32.mrb[0].mxu0
    %v401 = vadd.f32 0.0, %v400
    %v402 = vpop.f32.mrb[0].mxu0
    %v403 = vadd.f32 0.0, %v402
    %404 = vmatprep.mubr.f32.mxu0 0.0
    %405 = vmatmul.mubr.f32.gmra.mrb[0].mxu0 %v278
    %v406 = vpop.f32.mrb[0].mxu0
    %v407 = vadd.f32 0.0, %v406
    %v408 = vpop.f32.mrb[0].mxu0
    %v409 = vadd.f32 0.0, %v408
    %410 = vmatprep.mubr.f32.mxu0 0.0
    %411 = vmatmul.mubr.f32.gmra.mrb[0].mxu0 %v281
    %v412 = vpop.f32.mrb[0].mxu0
    %v413 = vadd.f32 0.0, %v412
    %v414 = vpop.f32.mrb[0].mxu0
    %v415 = vadd.f32 0.0, %v414
    %416 = vmatprep.mubr.f32.mxu0 0.0
    %417 = vmatmul.mubr.f32.gmra.mrb[0].mxu0 %v284
    %v418 = vpop.f32.mrb[0].mxu0
    %v419 = vadd.f32 0.0, %v418
    %v420 = vpop.f32.mrb[0].mxu0
    %v421 = vadd.f32 0.0, %v420
    %422 = vmatprep.mubr.f32.mxu0 0.0
    %423 = vmatmul.mubr.f32.gmra.mrb[0].mxu0 %v287
    %v424 = vpop.f32.mrb[0].mxu0
    %v425 = vadd.f32 0.0, %v424
    %v426 = vpop.f32.mrb[0].mxu0
    %v427 = vadd.f32 0.0, %v426
    %428 = vmatprep.mubr.f32.mxu0 0.0
    %429 = vmatmul.mubr.f32.gmra.mrb[0].mxu0 %v290
    %v430 = vpop.f32.mrb[0].mxu0
    %v431 = vadd.f32 0.0, %v430
    %v432 = vpop.f32.mrb[0].mxu0
    %v433 = vadd.f32 0.0, %v432
    %434 = vmatprep.mubr.f32.mxu0 0.0
    %435 = vmatmul.mubr.f32.gmra.mrb[0].mxu0 %v293
    %v436 = vpop.f32.mrb[0].mxu0
    %v437 = vadd.f32 0.0, %v436
    %v438 = vpop.f32.mrb[0].mxu0
    %v439 = vadd.f32 0.0, %v438
    %440 = vmatprep.mubr.f32.mxu0 0.0
    %441 = vmatmul.mubr.f32.gmra.mrb[0].mxu0 %v296
    %v442 = vpop.f32.mrb[0].mxu0
    %v443 = vadd.f32 0.0, %v442
    %v444 = vpop.f32.mrb[0].mxu0
    %v445 = vadd.f32 0.0, %v444
    %446 = vmatprep.mubr.f32.mxu0 0.0
    %447 = vmatmul.mubr.f32.gmra.mrb[0].mxu0 %v299
    %v448 = vpop.f32.mrb[0].mxu0
    %v449 = vadd.f32 0.0, %v448
    %v450 = vpop.f32.mrb[0].mxu0
    %v451 = vadd.f32 0.0, %v450
    %452 = vmatprep.mubr.f32.mxu0 0.0
    %453 = vmatmul.mubr.f32.gmra.mrb[0].mxu0 %v302
    %v454 = vpop.f32.mrb[0].mxu0
    %v455 = vadd.f32 0.0, %v454
    %v456 = vpop.f32.mrb[0].mxu0
    %v457 = vadd.f32 0.0, %v456
    %458 = vmatprep.mubr.f32.mxu0 0.0
    %459 = vmatmul.mubr.f32.gmra.mrb[0].mxu0 %v305
    %v460 = vpop.f32.mrb[0].mxu0
    %v461 = vadd.f32 0.0, %v460
    %v462 = vpop.f32.mrb[0].mxu0
    %v463 = vadd.f32 0.0, %v462
    %464 = vmatprep.mubr.f32.mxu0 0.0
    %465 = vmatmul.mubr.f32.gmra.mrb[0].mxu0 %v308
    %v466 = vpop.f32.mrb[0].mxu0
    %v467 = vadd.f32 0.0, %v466
    %v468 = vpop.f32.mrb[0].mxu0
    %v469 = vadd.f32 0.0, %v468
    %470 = vdwg.mxu0
    %v471 = vmul.f32 %v152, %v377
    %v472 = vmul.f32 %v158, %v383
    %v473 = vmul.f32 %v164, %v389
    %v474 = vmul.f32 %v170, %v395
    %v475 = vmul.f32 %v176, %v401
    %v476 = vmul.f32 %v182, %v407
    %v477 = vmul.f32 %v188, %v413
    %v478 = vmul.f32 %v194, %v419
    %v479 = vmul.f32 %v200, %v425
    %v480 = vmul.f32 %v206, %v431
    %v481 = vmul.f32 %v212, %v437
    %v482 = vmul.f32 %v218, %v443
    %v483 = vmul.f32 %v224, %v449
    %v484 = vmul.f32 %v230, %v455
    %v485 = vmul.f32 %v236, %v461
    %v486 = vmul.f32 %v242, %v467
    %v487 = vmul.f32 %v154, %v379
    %v488 = vmul.f32 %v160, %v385
    %v489 = vmul.f32 %v166, %v391
    %v490 = vmul.f32 %v172, %v397
    %v491 = vmul.f32 %v178, %v403
    %v492 = vmul.f32 %v184, %v409
    %v493 = vmul.f32 %v190, %v415
    %v494 = vmul.f32 %v196, %v421
    %v495 = vmul.f32 %v202, %v427
    %v496 = vmul.f32 %v208, %v433
    %v497 = vmul.f32 %v214, %v439
    %v498 = vmul.f32 %v220, %v445
    %v499 = vmul.f32 %v226, %v451
    %v500 = vmul.f32 %v232, %v457
    %v501 = vmul.f32 %v238, %v463
    %v502 = vmul.f32 %v244, %v469
    %v503 = vadd.f32 %v471, %v487
    %v504 = vadd.f32 %v472, %v488
    %v505 = vadd.f32 %v473, %v489
    %v506 = vadd.f32 %v474, %v490
    %v507 = vadd.f32 %v475, %v491
    %v508 = vadd.f32 %v476, %v492
    %v509 = vadd.f32 %v477, %v493
    %v510 = vadd.f32 %v478, %v494
    %v511 = vadd.f32 %v479, %v495
    %v512 = vadd.f32 %v480, %v496
    %v513 = vadd.f32 %v481, %v497
    %v514 = vadd.f32 %v482, %v498
    %v515 = vadd.f32 %v483, %v499
    %v516 = vadd.f32 %v484, %v500
    %v517 = vadd.f32 %v485, %v501
    %v518 = vadd.f32 %v486, %v502
    %v519 = vmul.f32 %v154, %v377
    %v520 = vmul.f32 %v160, %v383
    %v521 = vmul.f32 %v166, %v389
    %v522 = vmul.f32 %v172, %v395
    %v523 = vmul.f32 %v178, %v401
    %v524 = vmul.f32 %v184, %v407
    %v525 = vmul.f32 %v190, %v413
    %v526 = vmul.f32 %v196, %v419
    %v527 = vmul.f32 %v202, %v425
    %v528 = vmul.f32 %v208, %v431
    %v529 = vmul.f32 %v214, %v437
    %v530 = vmul.f32 %v220, %v443
    %v531 = vmul.f32 %v226, %v449
    %v532 = vmul.f32 %v232, %v455
    %v533 = vmul.f32 %v238, %v461
    %v534 = vmul.f32 %v244, %v467
    %v535 = vmul.f32 %v152, %v379
    %v536 = vmul.f32 %v158, %v385
    %v537 = vmul.f32 %v164, %v391
    %v538 = vmul.f32 %v170, %v397
    %v539 = vmul.f32 %v176, %v403
    %v540 = vmul.f32 %v182, %v409
    %v541 = vmul.f32 %v188, %v415
    %v542 = vmul.f32 %v194, %v421
    %v543 = vmul.f32 %v200, %v427
    %v544 = vmul.f32 %v206, %v433
    %v545 = vmul.f32 %v212, %v439
    %v546 = vmul.f32 %v218, %v445
    %v547 = vmul.f32 %v224, %v451
    %v548 = vmul.f32 %v230, %v457
    %v549 = vmul.f32 %v236, %v463
    %v550 = vmul.f32 %v242, %v469
    %v551 = vsub.f32 %v519, %v535
    %v552 = vsub.f32 %v520, %v536
    %v553 = vsub.f32 %v521, %v537
    %v554 = vsub.f32 %v522, %v538
    %v555 = vsub.f32 %v523, %v539
    %v556 = vsub.f32 %v524, %v540
    %v557 = vsub.f32 %v525, %v541
    %v558 = vsub.f32 %v526, %v542
    %v559 = vsub.f32 %v527, %v543
    %v560 = vsub.f32 %v528, %v544
    %v561 = vsub.f32 %v529, %v545
    %v562 = vsub.f32 %v530, %v546
    %v563 = vsub.f32 %v531, %v547
    %v564 = vsub.f32 %v532, %v548
    %v565 = vsub.f32 %v533, %v549
    %v566 = vsub.f32 %v534, %v550
    %v567 = vmul.f32 %v503, %v503
    %v568 = vmul.f32 %v504, %v504
    %v569 = vmul.f32 %v505, %v505
    %v570 = vmul.f32 %v506, %v506
    %v571 = vmul.f32 %v507, %v507
    %v572 = vmul.f32 %v508, %v508
    %v573 = vmul.f32 %v509, %v509
    %v574 = vmul.f32 %v510, %v510
    %v575 = vmul.f32 %v511, %v511
    %v576 = vmul.f32 %v512, %v512
    %v577 = vmul.f32 %v513, %v513
    %v578 = vmul.f32 %v514, %v514
    %v579 = vmul.f32 %v515, %v515
    %v580 = vmul.f32 %v516, %v516
    %v581 = vmul.f32 %v517, %v517
    %v582 = vmul.f32 %v518, %v518
    %v583 = vmul.f32 %v551, %v551
    %v584 = vmul.f32 %v552, %v552
    %v585 = vmul.f32 %v553, %v553
    %v586 = vmul.f32 %v554, %v554
    %v587 = vmul.f32 %v555, %v555
    %v588 = vmul.f32 %v556, %v556
    %v589 = vmul.f32 %v557, %v557
    %v590 = vmul.f32 %v558, %v558
    %v591 = vmul.f32 %v559, %v559
    %v592 = vmul.f32 %v560, %v560
    %v593 = vmul.f32 %v561, %v561
    %v594 = vmul.f32 %v562, %v562
    %v595 = vmul.f32 %v563, %v563
    %v596 = vmul.f32 %v564, %v564
    %v597 = vmul.f32 %v565, %v565
    %v598 = vmul.f32 %v566, %v566
    %v599 = vadd.f32 %v567, %v583
    %v600 = vadd.f32 %v568, %v584
    %v601 = vadd.f32 %v569, %v585
    %v602 = vadd.f32 %v570, %v586
    %v603 = vadd.f32 %v571, %v587
    %v604 = vadd.f32 %v572, %v588
    %v605 = vadd.f32 %v573, %v589
    %v606 = vadd.f32 %v574, %v590
    %v607 = vadd.f32 %v575, %v591
    %v608 = vadd.f32 %v576, %v592
    %v609 = vadd.f32 %v577, %v593
    %v610 = vadd.f32 %v578, %v594
    %v611 = vadd.f32 %v579, %v595
    %v612 = vadd.f32 %v580, %v596
    %v613 = vadd.f32 %v581, %v597
    %v614 = vadd.f32 %v582, %v598
    %v615 = vrsqrt.pop %v599
    %v616 = vmul.f32 %v599, %v615
    %vm617 = vcmp.eq.f32.partialorder %v599, inf
    %v618 = vsel %vm617, %v599, %v616
    %vm619 = vcmp.eq.f32.partialorder %v599, 0.0
    %v620 = vand.u32 %v599, 2147483648
    %v621 = vsel %vm619, %v620, %v618
    %v622 = vrsqrt.pop %v600
    %v623 = vmul.f32 %v600, %v622
    %vm624 = vcmp.eq.f32.partialorder %v600, inf
    %v625 = vsel %vm624, %v600, %v623
    %vm626 = vcmp.eq.f32.partialorder %v600, 0.0
    %v627 = vand.u32 %v600, 2147483648
    %v628 = vsel %vm626, %v627, %v625
    %v629 = vrsqrt.pop %v601
    %v630 = vmul.f32 %v601, %v629
    %vm631 = vcmp.eq.f32.partialorder %v601, inf
    %v632 = vsel %vm631, %v601, %v630
    %vm633 = vcmp.eq.f32.partialorder %v601, 0.0
    %v634 = vand.u32 %v601, 2147483648
    %v635 = vsel %vm633, %v634, %v632
    %v636 = vrsqrt.pop %v602
    %v637 = vmul.f32 %v602, %v636
    %vm638 = vcmp.eq.f32.partialorder %v602, inf
    %v639 = vsel %vm638, %v602, %v637
    %vm640 = vcmp.eq.f32.partialorder %v602, 0.0
    %v641 = vand.u32 %v602, 2147483648
    %v642 = vsel %vm640, %v641, %v639
    %v643 = vrsqrt.pop %v603
    %v644 = vmul.f32 %v603, %v643
    %vm645 = vcmp.eq.f32.partialorder %v603, inf
    %v646 = vsel %vm645, %v603, %v644
    %vm647 = vcmp.eq.f32.partialorder %v603, 0.0
    %v648 = vand.u32 %v603, 2147483648
    %v649 = vsel %vm647, %v648, %v646
    %v650 = vrsqrt.pop %v604
    %v651 = vmul.f32 %v604, %v650
    %vm652 = vcmp.eq.f32.partialorder %v604, inf
    %v653 = vsel %vm652, %v604, %v651
    %vm654 = vcmp.eq.f32.partialorder %v604, 0.0
    %v655 = vand.u32 %v604, 2147483648
    %v656 = vsel %vm654, %v655, %v653
    %v657 = vrsqrt.pop %v605
    %v658 = vmul.f32 %v605, %v657
    %vm659 = vcmp.eq.f32.partialorder %v605, inf
    %v660 = vsel %vm659, %v605, %v658
    %vm661 = vcmp.eq.f32.partialorder %v605, 0.0
    %v662 = vand.u32 %v605, 2147483648
    %v663 = vsel %vm661, %v662, %v660
    %v664 = vrsqrt.pop %v606
    %v665 = vmul.f32 %v606, %v664
    %vm666 = vcmp.eq.f32.partialorder %v606, inf
    %v667 = vsel %vm666, %v606, %v665
    %vm668 = vcmp.eq.f32.partialorder %v606, 0.0
    %v669 = vand.u32 %v606, 2147483648
    %v670 = vsel %vm668, %v669, %v667
    %v671 = vrsqrt.pop %v607
    %v672 = vmul.f32 %v607, %v671
    %vm673 = vcmp.eq.f32.partialorder %v607, inf
    %v674 = vsel %vm673, %v607, %v672
    %vm675 = vcmp.eq.f32.partialorder %v607, 0.0
    %v676 = vand.u32 %v607, 2147483648
    %v677 = vsel %vm675, %v676, %v674
    %v678 = vrsqrt.pop %v608
    %v679 = vmul.f32 %v608, %v678
    %vm680 = vcmp.eq.f32.partialorder %v608, inf
    %v681 = vsel %vm680, %v608, %v679
    %vm682 = vcmp.eq.f32.partialorder %v608, 0.0
    %v683 = vand.u32 %v608, 2147483648
    %v684 = vsel %vm682, %v683, %v681
    %v685 = vrsqrt.pop %v609
    %v686 = vmul.f32 %v609, %v685
    %vm687 = vcmp.eq.f32.partialorder %v609, inf
    %v688 = vsel %vm687, %v609, %v686
    %vm689 = vcmp.eq.f32.partialorder %v609, 0.0
    %v690 = vand.u32 %v609, 2147483648
    %v691 = vsel %vm689, %v690, %v688
    %v692 = vrsqrt.pop %v610
    %v693 = vmul.f32 %v610, %v692
    %vm694 = vcmp.eq.f32.partialorder %v610, inf
    %v695 = vsel %vm694, %v610, %v693
    %vm696 = vcmp.eq.f32.partialorder %v610, 0.0
    %v697 = vand.u32 %v610, 2147483648
    %v698 = vsel %vm696, %v697, %v695
    %v699 = vrsqrt.pop %v611
    %v700 = vmul.f32 %v611, %v699
    %vm701 = vcmp.eq.f32.partialorder %v611, inf
    %v702 = vsel %vm701, %v611, %v700
    %vm703 = vcmp.eq.f32.partialorder %v611, 0.0
    %v704 = vand.u32 %v611, 2147483648
    %v705 = vsel %vm703, %v704, %v702
    %v706 = vrsqrt.pop %v612
    %v707 = vmul.f32 %v612, %v706
    %vm708 = vcmp.eq.f32.partialorder %v612, inf
    %v709 = vsel %vm708, %v612, %v707
    %vm710 = vcmp.eq.f32.partialorder %v612, 0.0
    %v711 = vand.u32 %v612, 2147483648
    %v712 = vsel %vm710, %v711, %v709
    %v713 = vrsqrt.pop %v613
    %v714 = vmul.f32 %v613, %v713
    %vm715 = vcmp.eq.f32.partialorder %v613, inf
    %v716 = vsel %vm715, %v613, %v714
    %vm717 = vcmp.eq.f32.partialorder %v613, 0.0
    %v718 = vand.u32 %v613, 2147483648
    %v719 = vsel %vm717, %v718, %v716
    %v720 = vrsqrt.pop %v614
    %v721 = vmul.f32 %v614, %v720
    %vm722 = vcmp.eq.f32.partialorder %v614, inf
    %v723 = vsel %vm722, %v614, %v721
    %vm724 = vcmp.eq.f32.partialorder %v614, 0.0
    %v725 = vand.u32 %v614, 2147483648
    %v726 = vsel %vm724, %v725, %v723
    %v727 = vadd.f32 %v621, 0.001
    %v728 = vadd.f32 %v628, 0.001
    %v729 = vadd.f32 %v635, 0.001
    %v730 = vadd.f32 %v642, 0.001
    %v731 = vadd.f32 %v649, 0.001
    %v732 = vadd.f32 %v656, 0.001
    %v733 = vadd.f32 %v663, 0.001
    %v734 = vadd.f32 %v670, 0.001
    %v735 = vadd.f32 %v677, 0.001
    %v736 = vadd.f32 %v684, 0.001
    %v737 = vadd.f32 %v691, 0.001
    %v738 = vadd.f32 %v698, 0.001
    %v739 = vadd.f32 %v705, 0.001
    %v740 = vadd.f32 %v712, 0.001
    %v741 = vadd.f32 %v719, 0.001
    %v742 = vadd.f32 %v726, 0.001
    %v743 = vrcp.pop %v727
    %v744 = vrcp.pop %v728
    %v745 = vrcp.pop %v729
    %v746 = vrcp.pop %v730
    %v747 = vrcp.pop %v731
    %v748 = vrcp.pop %v732
    %v749 = vrcp.pop %v733
    %v750 = vrcp.pop %v734
    %v751 = vrcp.pop %v735
    %v752 = vrcp.pop %v736
    %v753 = vrcp.pop %v737
    %v754 = vrcp.pop %v738
    %v755 = vrcp.pop %v739
    %v756 = vrcp.pop %v740
    %v757 = vrcp.pop %v741
    %v758 = vrcp.pop %v742
    %v759 = vmul.f32 %v503, %v743
    %v760 = vmul.f32 %v504, %v744
    %v761 = vmul.f32 %v505, %v745
    %v762 = vmul.f32 %v506, %v746
    %v763 = vmul.f32 %v507, %v747
    %v764 = vmul.f32 %v508, %v748
    %v765 = vmul.f32 %v509, %v749
    %v766 = vmul.f32 %v510, %v750
    %v767 = vmul.f32 %v511, %v751
    %v768 = vmul.f32 %v512, %v752
    %v769 = vmul.f32 %v513, %v753
    %v770 = vmul.f32 %v514, %v754
    %v771 = vmul.f32 %v515, %v755
    %v772 = vmul.f32 %v516, %v756
    %v773 = vmul.f32 %v517, %v757
    %v774 = vmul.f32 %v518, %v758
    %v775 = vmul.f32 %v551, %v743
    %v776 = vmul.f32 %v552, %v744
    %v777 = vmul.f32 %v553, %v745
    %v778 = vmul.f32 %v554, %v746
    %v779 = vmul.f32 %v555, %v747
    %v780 = vmul.f32 %v556, %v748
    %v781 = vmul.f32 %v557, %v749
    %v782 = vmul.f32 %v558, %v750
    %v783 = vmul.f32 %v559, %v751
    %v784 = vmul.f32 %v560, %v752
    %v785 = vmul.f32 %v561, %v753
    %v786 = vmul.f32 %v562, %v754
    %v787 = vmul.f32 %v563, %v755
    %v788 = vmul.f32 %v564, %v756
    %v789 = vmul.f32 %v565, %v757
    %v790 = vmul.f32 %v566, %v758
    %v791 = vld [vmem:[%s3] sm:$0xff]
    %v792 = vld [vmem:[%s3 + $0x8] sm:$0xff]
    %v793 = vld [vmem:[%s3 + $0x10] sm:$0xff]
    %v794 = vld [vmem:[%s3 + $0x18] sm:$0xff]
    %v795 = vld [vmem:[%s3 + $0x20] sm:$0xff]
    %v796 = vld [vmem:[%s3 + $0x28] sm:$0xff]
    %v797 = vld [vmem:[%s3 + $0x30] sm:$0xff]
    %v798 = vld [vmem:[%s3 + $0x38] sm:$0xff]
    %v799 = vld [vmem:[%s3 + $0x40] sm:$0xff]
    %v800 = vld [vmem:[%s3 + $0x48] sm:$0xff]
    %v801 = vld [vmem:[%s3 + $0x50] sm:$0xff]
    %v802 = vld [vmem:[%s3 + $0x58] sm:$0xff]
    %v803 = vld [vmem:[%s3 + $0x60] sm:$0xff]
    %v804 = vld [vmem:[%s3 + $0x68] sm:$0xff]
    %v805 = vld [vmem:[%s3 + $0x70] sm:$0xff]
    %v806 = vld [vmem:[%s3 + $0x78] sm:$0xff]
    %v807 = vld [vmem:[%s3 + $0x80] sm:$0xff]
    %v808 = vld [vmem:[%s3 + $0x88] sm:$0xff]
    %v809 = vld [vmem:[%s3 + $0x90] sm:$0xff]
    %v810 = vld [vmem:[%s3 + $0x98] sm:$0xff]
    %v811 = vld [vmem:[%s3 + $0xa0] sm:$0xff]
    %v812 = vld [vmem:[%s3 + $0xa8] sm:$0xff]
    %v813 = vld [vmem:[%s3 + $0xb0] sm:$0xff]
    %v814 = vld [vmem:[%s3 + $0xb8] sm:$0xff]
    %v815 = vld [vmem:[%s3 + $0xc0] sm:$0xff]
    %v816 = vld [vmem:[%s3 + $0xc8] sm:$0xff]
    %v817 = vld [vmem:[%s3 + $0xd0] sm:$0xff]
    %v818 = vld [vmem:[%s3 + $0xd8] sm:$0xff]
    %v819 = vld [vmem:[%s3 + $0xe0] sm:$0xff]
    %v820 = vld [vmem:[%s3 + $0xe8] sm:$0xff]
    %v821 = vld [vmem:[%s3 + $0xf0] sm:$0xff]
    %v822 = vld [vmem:[%s3 + $0xf8] sm:$0xff]
    %823 = vmatprep.subr.mxu0 0.0
    %824 = vmatpush1.msra.mxu0 %v791
    %825 = vmatprep.subr.mxu0 0.0
    %826 = vmatpush1.msra.mxu0 %v792
    %827 = vmatprep.subr.mxu0 0.0
    %828 = vmatpush1.msra.mxu0 %v793
    %829 = vmatprep.subr.mxu0 0.0
    %830 = vmatpush1.msra.mxu0 %v794
    %831 = vmatprep.subr.mxu0 0.0
    %832 = vmatpush1.msra.mxu0 %v795
    %833 = vmatprep.subr.mxu0 0.0
    %834 = vmatpush1.msra.mxu0 %v796
    %835 = vmatprep.subr.mxu0 0.0
    %836 = vmatpush1.msra.mxu0 %v797
    %837 = vmatprep.subr.mxu0 0.0
    %838 = vmatpush1.msra.mxu0 %v798
    %839 = vmatprep.subr.mxu0 0.0
    %840 = vmatpush1.msra.mxu0 %v799
    %841 = vmatprep.subr.mxu0 0.0
    %842 = vmatpush1.msra.mxu0 %v800
    %843 = vmatprep.subr.mxu0 0.0
    %844 = vmatpush1.msra.mxu0 %v801
    %845 = vmatprep.subr.mxu0 0.0
    %846 = vmatpush1.msra.mxu0 %v802
    %847 = vmatprep.subr.mxu0 0.0
    %848 = vmatpush1.msra.mxu0 %v803
    %849 = vmatprep.subr.mxu0 0.0
    %850 = vmatpush1.msra.mxu0 %v804
    %851 = vmatprep.subr.mxu0 0.0
    %852 = vmatpush1.msra.mxu0 %v805
    %853 = vmatprep.subr.mxu0 0.0
    %854 = vmatpush1.msra.mxu0 %v806
    %855 = vmatprep.subr.mxu0 0.0
    %856 = vmatpush1.msra.mxu0 %v807
    %857 = vmatprep.subr.mxu0 0.0
    %858 = vmatpush1.msra.mxu0 %v808
    %859 = vmatprep.subr.mxu0 0.0
    %860 = vmatpush1.msra.mxu0 %v809
    %861 = vmatprep.subr.mxu0 0.0
    %862 = vmatpush1.msra.mxu0 %v810
    %863 = vmatprep.subr.mxu0 0.0
    %864 = vmatpush1.msra.mxu0 %v811
    %865 = vmatprep.subr.mxu0 0.0
    %866 = vmatpush1.msra.mxu0 %v812
    %867 = vmatprep.subr.mxu0 0.0
    %868 = vmatpush1.msra.mxu0 %v813
    %869 = vmatprep.subr.mxu0 0.0
    %870 = vmatpush1.msra.mxu0 %v814
    %871 = vmatprep.subr.mxu0 0.0
    %872 = vmatpush1.msra.mxu0 %v815
    %873 = vmatprep.subr.mxu0 0.0
    %874 = vmatpush1.msra.mxu0 %v816
    %875 = vmatprep.subr.mxu0 0.0
    %876 = vmatpush1.msra.mxu0 %v817
    %877 = vmatprep.subr.mxu0 0.0
    %878 = vmatpush1.msra.mxu0 %v818
    %879 = vmatprep.subr.mxu0 0.0
    %880 = vmatpush1.msra.mxu0 %v819
    %881 = vmatprep.subr.mxu0 0.0
    %882 = vmatpush1.msra.mxu0 %v820
    %883 = vmatprep.subr.mxu0 0.0
    %884 = vmatpush1.msra.mxu0 %v821
    %885 = vmatprep.subr.mxu0 0.0
    %886 = vmatpush1.msra.mxu0 %v822
    %887 = vmatprep.mubr.f32.mxu0 %v775
    %888 = vmatmul.mubr.f32.gmra.mrb[0].mxu0 %v759
    %v889 = vpop.f32.mrb[0].mxu0
    %v890 = vadd.f32 0.0, %v889
    %v891 = vpop.f32.mrb[0].mxu0
    %892 = vmatprep.mubr.f32.mxu0 %v776
    %893 = vmatmul.mubr.f32.gmra.mrb[0].mxu0 %v760
    %v894 = vpop.f32.mrb[0].mxu0
    %v895 = vadd.f32 0.0, %v894
    %v896 = vpop.f32.mrb[0].mxu0
    %897 = vmatprep.mubr.f32.mxu0 %v777
    %898 = vmatmul.mubr.f32.gmra.mrb[0].mxu0 %v761
    %v899 = vpop.f32.mrb[0].mxu0
    %v900 = vadd.f32 0.0, %v899
    %v901 = vpop.f32.mrb[0].mxu0
    %902 = vmatprep.mubr.f32.mxu0 %v778
    %903 = vmatmul.mubr.f32.gmra.mrb[0].mxu0 %v762
    %v904 = vpop.f32.mrb[0].mxu0
    %v905 = vadd.f32 0.0, %v904
    %v906 = vpop.f32.mrb[0].mxu0
    %907 = vmatprep.mubr.f32.mxu0 %v779
    %908 = vmatmul.mubr.f32.gmra.mrb[0].mxu0 %v763
    %v909 = vpop.f32.mrb[0].mxu0
    %v910 = vadd.f32 0.0, %v909
    %v911 = vpop.f32.mrb[0].mxu0
    %912 = vmatprep.mubr.f32.mxu0 %v780
    %913 = vmatmul.mubr.f32.gmra.mrb[0].mxu0 %v764
    %v914 = vpop.f32.mrb[0].mxu0
    %v915 = vadd.f32 0.0, %v914
    %v916 = vpop.f32.mrb[0].mxu0
    %917 = vmatprep.mubr.f32.mxu0 %v781
    %918 = vmatmul.mubr.f32.gmra.mrb[0].mxu0 %v765
    %v919 = vpop.f32.mrb[0].mxu0
    %v920 = vadd.f32 0.0, %v919
    %v921 = vpop.f32.mrb[0].mxu0
    %922 = vmatprep.mubr.f32.mxu0 %v782
    %923 = vmatmul.mubr.f32.gmra.mrb[0].mxu0 %v766
    %v924 = vpop.f32.mrb[0].mxu0
    %v925 = vadd.f32 0.0, %v924
    %v926 = vpop.f32.mrb[0].mxu0
    %927 = vmatprep.mubr.f32.mxu0 %v783
    %928 = vmatmul.mubr.f32.gmra.mrb[0].mxu0 %v767
    %v929 = vpop.f32.mrb[0].mxu0
    %v930 = vadd.f32 0.0, %v929
    %v931 = vpop.f32.mrb[0].mxu0
    %932 = vmatprep.mubr.f32.mxu0 %v784
    %933 = vmatmul.mubr.f32.gmra.mrb[0].mxu0 %v768
    %v934 = vpop.f32.mrb[0].mxu0
    %v935 = vadd.f32 0.0, %v934
    %v936 = vpop.f32.mrb[0].mxu0
    %937 = vmatprep.mubr.f32.mxu0 %v785
    %938 = vmatmul.mubr.f32.gmra.mrb[0].mxu0 %v769
    %v939 = vpop.f32.mrb[0].mxu0
    %v940 = vadd.f32 0.0, %v939
    %v941 = vpop.f32.mrb[0].mxu0
    %942 = vmatprep.mubr.f32.mxu0 %v786
    %943 = vmatmul.mubr.f32.gmra.mrb[0].mxu0 %v770
    %v944 = vpop.f32.mrb[0].mxu0
    %v945 = vadd.f32 0.0, %v944
    %v946 = vpop.f32.mrb[0].mxu0
    %947 = vmatprep.mubr.f32.mxu0 %v787
    %948 = vmatmul.mubr.f32.gmra.mrb[0].mxu0 %v771
    %v949 = vpop.f32.mrb[0].mxu0
    %v950 = vadd.f32 0.0, %v949
    %v951 = vpop.f32.mrb[0].mxu0
    %952 = vmatprep.mubr.f32.mxu0 %v788
    %953 = vmatmul.mubr.f32.gmra.mrb[0].mxu0 %v772
    %v954 = vpop.f32.mrb[0].mxu0
    %v955 = vadd.f32 0.0, %v954
    %v956 = vpop.f32.mrb[0].mxu0
    %957 = vmatprep.mubr.f32.mxu0 %v789
    %958 = vmatmul.mubr.f32.gmra.mrb[0].mxu0 %v773
    %v959 = vpop.f32.mrb[0].mxu0
    %v960 = vadd.f32 0.0, %v959
    %v961 = vpop.f32.mrb[0].mxu0
    %962 = vmatprep.mubr.f32.mxu0 %v790
    %963 = vmatmul.mubr.f32.gmra.mrb[0].mxu0 %v774
    %v964 = vpop.f32.mrb[0].mxu0
    %v965 = vadd.f32 0.0, %v964
    %v966 = vpop.f32.mrb[0].mxu0
    %967 = vdwg.mxu0
    %p968 = scmp.eq.s32.totalorder 0, 0
    // Predicated region
    $region18: #{tpu_custom_call.1} parent=1 // pred_check
      %p969 = pneg %p968
    $region19: #{tpu_custom_call.1} parent=1 // pred_check_branch
      %971 = sbr.rel (%p969) target = $region21
    $region20: #{tpu_custom_call.1} parent=1 // pred_region
      %972 = vst [vmem:[#allocation2] sm:$0xff] %v890
      %973 = vst [vmem:[#allocation2 + $0x8] sm:$0xff] %v895
      %974 = vst [vmem:[#allocation2 + $0x10] sm:$0xff] %v900
      %975 = vst [vmem:[#allocation2 + $0x18] sm:$0xff] %v905
      %976 = vst [vmem:[#allocation2 + $0x20] sm:$0xff] %v910
      %977 = vst [vmem:[#allocation2 + $0x28] sm:$0xff] %v915
      %978 = vst [vmem:[#allocation2 + $0x30] sm:$0xff] %v920
      %979 = vst [vmem:[#allocation2 + $0x38] sm:$0xff] %v925
      %980 = vst [vmem:[#allocation2 + $0x40] sm:$0xff] %v930
      %981 = vst [vmem:[#allocation2 + $0x48] sm:$0xff] %v935
      %982 = vst [vmem:[#allocation2 + $0x50] sm:$0xff] %v940
      %983 = vst [vmem:[#allocation2 + $0x58] sm:$0xff] %v945
      %984 = vst [vmem:[#allocation2 + $0x60] sm:$0xff] %v950
      %985 = vst [vmem:[#allocation2 + $0x68] sm:$0xff] %v955
      %986 = vst [vmem:[#allocation2 + $0x70] sm:$0xff] %v960
      %987 = vst [vmem:[#allocation2 + $0x78] sm:$0xff] %v965
    $region21: #{tpu_custom_call.1} parent=1 // pred_fallthru
      _
    %p988 = scmp.gt.s32.totalorder 0, 0
    // Predicated region
    $region22: #{tpu_custom_call.1} parent=1 // pred_check
      %p989 = pneg %p988
    $region23: #{tpu_custom_call.1} parent=1 // pred_check_branch
      %991 = sbr.rel (%p989) target = $region25
    $region24: #{tpu_custom_call.1} parent=1 // pred_region
      %v992 = vld [vmem:[#allocation2] sm:$0xff]
      %v993 = vld [vmem:[#allocation2 + $0x8] sm:$0xff]
      %v994 = vld [vmem:[#allocation2 + $0x10] sm:$0xff]
      %v995 = vld [vmem:[#allocation2 + $0x18] sm:$0xff]
      %v996 = vld [vmem:[#allocation2 + $0x20] sm:$0xff]
      %v997 = vld [vmem:[#allocation2 + $0x28] sm:$0xff]
      %v998 = vld [vmem:[#allocation2 + $0x30] sm:$0xff]
      %v999 = vld [vmem:[#allocation2 + $0x38] sm:$0xff]
      %v1000 = vld [vmem:[#allocation2 + $0x40] sm:$0xff]
      %v1001 = vld [vmem:[#allocation2 + $0x48] sm:$0xff]
      %v1002 = vld [vmem:[#allocation2 + $0x50] sm:$0xff]
      %v1003 = vld [vmem:[#allocation2 + $0x58] sm:$0xff]
      %v1004 = vld [vmem:[#allocation2 + $0x60] sm:$0xff]
      %v1005 = vld [vmem:[#allocation2 + $0x68] sm:$0xff]
      %v1006 = vld [vmem:[#allocation2 + $0x70] sm:$0xff]
      %v1007 = vld [vmem:[#allocation2 + $0x78] sm:$0xff]
      %v1008 = vadd.f32 %v992, %v890
      %v1009 = vadd.f32 %v993, %v895
      %v1010 = vadd.f32 %v994, %v900
      %v1011 = vadd.f32 %v995, %v905
      %v1012 = vadd.f32 %v996, %v910
      %v1013 = vadd.f32 %v997, %v915
      %v1014 = vadd.f32 %v998, %v920
      %v1015 = vadd.f32 %v999, %v925
      %v1016 = vadd.f32 %v1000, %v930
      %v1017 = vadd.f32 %v1001, %v935
      %v1018 = vadd.f32 %v1002, %v940
      %v1019 = vadd.f32 %v1003, %v945
      %v1020 = vadd.f32 %v1004, %v950
      %v1021 = vadd.f32 %v1005, %v955
      %v1022 = vadd.f32 %v1006, %v960
      %v1023 = vadd.f32 %v1007, %v965
      %1024 = vst [vmem:[#allocation2] sm:$0xff] %v1008
      %1025 = vst [vmem:[#allocation2 + $0x8] sm:$0xff] %v1009
      %1026 = vst [vmem:[#allocation2 + $0x10] sm:$0xff] %v1010
      %1027 = vst [vmem:[#allocation2 + $0x18] sm:$0xff] %v1011
      %1028 = vst [vmem:[#allocation2 + $0x20] sm:$0xff] %v1012
      %1029 = vst [vmem:[#allocation2 + $0x28] sm:$0xff] %v1013
      %1030 = vst [vmem:[#allocation2 + $0x30] sm:$0xff] %v1014
      %1031 = vst [vmem:[#allocation2 + $0x38] sm:$0xff] %v1015
      %1032 = vst [vmem:[#allocation2 + $0x40] sm:$0xff] %v1016
      %1033 = vst [vmem:[#allocation2 + $0x48] sm:$0xff] %v1017
      %1034 = vst [vmem:[#allocation2 + $0x50] sm:$0xff] %v1018
      %1035 = vst [vmem:[#allocation2 + $0x58] sm:$0xff] %v1019
      %1036 = vst [vmem:[#allocation2 + $0x60] sm:$0xff] %v1020
      %1037 = vst [vmem:[#allocation2 + $0x68] sm:$0xff] %v1021
      %1038 = vst [vmem:[#allocation2 + $0x70] sm:$0xff] %v1022
      %1039 = vst [vmem:[#allocation2 + $0x78] sm:$0xff] %v1023
    $region25: #{tpu_custom_call.1} parent=1 // pred_fallthru
      _
    // Predicated region
    $region26: #{tpu_custom_call.1} parent=1 // pred_check
      _
    $region27: #{tpu_custom_call.1} parent=1 // pred_check_branch
      %1041 = sbr.rel (0) target = $region29
    $region28: #{tpu_custom_call.1} parent=1 // pred_region
      %s1043 = ssub.s32 2048, 2048
      %1044 = vsyncadd [#allocation3], %s1043
      %s1045 = sshll.u32 [#allocation2], 4
      %s1046 = int_to_ptr.vmem [resolvable:$true] %s1045
      %1051 = dma.vmem_to_hbm [thread:$0]  %s1046, 2048, %s4, [#allocation3], 128, 128, 8
    $region29: #{tpu_custom_call.1} parent=1 // pred_fallthru
      _
    // Predicated region
    $region30: #{tpu_custom_call.1} parent=1 // pred_check
      _
    $region31: #{tpu_custom_call.1} parent=1 // pred_check_branch
      %1053 = sbr.rel (0) target = $region33
    $region32: #{tpu_custom_call.1} parent=1 // pred_region
      %1054 = dma.done [#allocation3], 2048
    $region33: #{tpu_custom_call.1} parent=1 // pred_fallthru
      _
    %1055 = vsyncpa [#allocation3], 1

</llo_original>
